<compile_context>
chip_gen: v7x
topology: tpu7x:2x2x1
jax: 0.10.0
libtpu: 0.0.40
codegen_flags: <defaults>
</compile_context>

<pallas_src>
import functools

import jax
import jax.numpy as jnp
from jax.experimental import pallas as pl
from jax.experimental.pallas import tpu as pltpu


def _huber_partial_kernel(pred_ref, gt_ref, acc_ref, *, tile_r, acc_r, lane,
                          rows_valid, tiles_per_part, need_row_mask):
    """Accumulate per-(sublane, lane) partial Huber sums for one part."""
    t = pl.program_id(1)

    @pl.when(t == 0)
    def _():
        acc_ref[...] = jnp.zeros_like(acc_ref)

    p = pred_ref[...].astype(jnp.float32)
    g = gt_ref[...].astype(jnp.float32)

    valid = g > 0.0
    if need_row_mask:
        # Mask rows past the end of the real array (partial last row-tile and any
        # duplicated clamp tile) by their *logical* global row index.
        part = pl.program_id(0)
        row0 = (part * tiles_per_part + t) * tile_r
        row_idx = row0 + jax.lax.broadcasted_iota(jnp.int32, (tile_r, lane), 0)
        valid = jnp.logical_and(valid, row_idx < rows_valid)

    err = jnp.where(valid, p - g, 0.0)            # == (p - g) * mask
    abs_e = jnp.abs(err)
    m = jnp.minimum(abs_e, 1.0)
    h = m * (abs_e - 0.5 * m)                     # branch-free smooth_l1, beta = 1

    if acc_r == tile_r:
        acc_ref[...] += h
    else:
        # Sublane-group fold: (tile_r, lane) -> (acc_r, lane), vreg adds only.
        acc_ref[...] += jnp.sum(h.reshape(tile_r // acc_r, acc_r, lane), axis=0)


def _is_dual_tensorcore_chip():
    try:
        kind = jax.devices()[0].device_kind
    except Exception:
        return False
    return "v7" in kind.lower()


def huber_delta1_loss(prediction, gt, input=None):
    """prediction, gt: float arrays -> scalar f32 loss (mean over all elements)."""
    del input  # unused by the reference module's forward
    if gt.shape != prediction.shape:
        # TODO(synk): express the broadcast via gt's BlockSpec index_map instead of
        # materializing an expanded copy (only hit if shapes ever differ).
        gt = jnp.broadcast_to(gt, prediction.shape)

    total = int(prediction.size)                  # static denominator of the mean

    # ---- lane-dense 2-D view (free reshape, no data movement) ----------------
    lane = None
    for cand in (512, 256, 128):
        if total % cand == 0 and total // cand >= 8:
            lane = cand
            break
    if lane is None:
        for cand in (512, 256, 128):
            if total % cand == 0:
                lane = cand
                break

    p_flat = prediction.reshape(-1)
    g_flat = gt.reshape(-1)
    if lane is None:
        # Rare ragged fallback: minimal pad to the next multiple of 128.  The
        # padded gt entries are 0, so the (gt > 0) mask kills their contribution.
        lane = 128
        pad = (-total) % lane
        p_flat = jnp.pad(p_flat, (0, pad))
        g_flat = jnp.pad(g_flat, (0, pad))

    rows = p_flat.size // lane
    p2 = p_flat.reshape(rows, lane)
    g2 = g_flat.reshape(rows, lane)
    itemsize = jnp.dtype(p2.dtype).itemsize

    # ---- tiling ----------------------------------------------------------------
    tile_target = max(8, (1 << 20) // (lane * 4))   # ~1 MiB (f32) per input tile
    tile_r = tile_target if rows > tile_target else rows
    num_tiles = -(-rows // tile_r)

    dual_tc = _is_dual_tensorcore_chip()
    num_parts = 2 if (dual_tc and num_tiles >= 2) else 1
    tiles_per_part = -(-num_tiles // num_parts)
    need_row_mask = (num_parts * tiles_per_part * tile_r != rows)
    overshoot = num_parts * tiles_per_part > num_tiles

    acc_r = 8 if (tile_r % 8 == 0 and tile_r > 8) else tile_r

    if overshoot:
        def in_map(part, t):
            # Clamp keeps the duplicated tail tile in-bounds; the kernel's row mask
            # (computed from the *unclamped* logical index) zeroes its contribution.
            return (jnp.minimum(part * tiles_per_part + t, num_tiles - 1), 0)
    else:
        def in_map(part, t):
            return (part * tiles_per_part + t, 0)

    bspec_kwargs = {}
    if dual_tc:
        bspec_kwargs["pipeline_mode"] = pl.Buffered(3)   # hide DMA jitter on v7x
    in_specs = [pl.BlockSpec((tile_r, lane), in_map, **bspec_kwargs),
                pl.BlockSpec((tile_r, lane), in_map, **bspec_kwargs)]

    kernel = functools.partial(
        _huber_partial_kernel,
        tile_r=tile_r, acc_r=acc_r, lane=lane, rows_valid=rows,
        tiles_per_part=tiles_per_part, need_row_mask=need_row_mask)

    processed = num_parts * tiles_per_part * tile_r * lane
    cost = pl.CostEstimate(
        flops=8 * processed,
        transcendentals=0,
        bytes_accessed=2 * rows * lane * itemsize + num_parts * acc_r * lane * 4)

    partial = pl.pallas_call(
        kernel,
        out_shape=jax.ShapeDtypeStruct((num_parts * acc_r, lane), jnp.float32),
        grid_spec=pltpu.PrefetchScalarGridSpec(
            num_scalar_prefetch=0,
            grid=(num_parts, tiles_per_part),
            in_specs=in_specs,
            out_specs=pl.BlockSpec((acc_r, lane), lambda part, t: (part, 0)),
        ),
        compiler_params=pltpu.CompilerParams(
            dimension_semantics=("parallel", "arbitrary")),
        cost_estimate=cost,
    )(p2, g2)

    # torch.mean over every element (masked-out / padded entries contribute 0).
    return jnp.sum(partial) / jnp.float32(total)


if __name__ == "__main__":
    key = jax.random.PRNGKey(0)
    kp, kg, ki = jax.random.split(key, 3)

    # Small NCHW shapes consistent with the module's depth-completion usage.
    prediction = jax.random.normal(kp, (2, 4, 16, 16), dtype=jnp.float32)
    gt = jax.random.normal(kg, (2, 4, 16, 16), dtype=jnp.float32)   # mix of >0 / <=0
    rgb = jax.random.normal(ki, (2, 4, 16, 16), dtype=jnp.float32)  # unused 'input'

    loss_fn = jax.jit(huber_delta1_loss)
    out = jax.block_until_ready(loss_fn(prediction, gt, rgb))

    # Pure-JAX reference of the PyTorch forward.
    mask = (gt > 0).astype(jnp.float32)
    diff = prediction * mask - gt * mask
    ad = jnp.abs(diff)
    ref = jnp.mean(jnp.where(ad < 1.0, 0.5 * diff * diff, ad - 0.5))

    assert jnp.allclose(out, ref, rtol=1e-5, atol=1e-6), (out, ref)
    print("KERNEL_OK")
</pallas_src>

<mosaic_0001>
module attributes {stable_mosaic.version = 11 : i64} {
  func.func @_huber_partial_kernel(%arg0: i32, %arg1: i32, %arg2: memref<8x256xf32, #tpu.memory_space<vmem>>, %arg3: memref<8x256xf32, #tpu.memory_space<vmem>>, %arg4: memref<8x256xf32, #tpu.memory_space<vmem>>) attributes {dimension_semantics = [#tpu.dimension_semantics<parallel>, #tpu.dimension_semantics<arbitrary>], iteration_bounds = array<i64: 1, 1>, scalar_prefetch = 0 : i64, scratch_operands = 0 : i64, tpu.core_type = #tpu.core_type<tc>, window_params = [{transform_indices = @transform_0, window_bounds = array<i64: 8, 256>}, {transform_indices = @transform_1, window_bounds = array<i64: 8, 256>}, {transform_indices = @transform_2, window_bounds = array<i64: 8, 256>}]} {
    %c0_i32 = arith.constant 0 : i32
    %0 = arith.cmpi eq, %arg1, %c0_i32 : i32
    %1 = arith.extui %0 : i1 to i32
    %c0_i32_0 = arith.constant 0 : i32
    %2 = arith.cmpi ne, %1, %c0_i32_0 : i32
    scf.if %2 {
      %cst_11 = arith.constant 0.000000e+00 : f32
      %20 = vector.broadcast %cst_11 : f32 to vector<8x256xf32>
      %c0_12 = arith.constant 0 : index
      %c0_13 = arith.constant 0 : index
      %21 = vector.load %arg4[%c0_12, %c0_13] : memref<8x256xf32, #tpu.memory_space<vmem>>, vector<8x256xf32>
      tpu.vector_store %arg4[%c0_12, %c0_13], %20 {strides = array<i32>} : memref<8x256xf32, #tpu.memory_space<vmem>>, vector<8x256xf32>,
    } else {
    }
    %c0 = arith.constant 0 : index
    %c0_1 = arith.constant 0 : index
    %3 = vector.load %arg2[%c0, %c0_1] : memref<8x256xf32, #tpu.memory_space<vmem>>, vector<8x256xf32>
    %c0_2 = arith.constant 0 : index
    %c0_3 = arith.constant 0 : index
    %4 = vector.load %arg3[%c0_2, %c0_3] : memref<8x256xf32, #tpu.memory_space<vmem>>, vector<8x256xf32>
    %cst = arith.constant 0.000000e+00 : f32
    %5 = vector.broadcast %cst : f32 to vector<8x256xf32>
    %6 = arith.cmpf ogt, %4, %5 : vector<8x256xf32>
    %7 = arith.subf %3, %4 : vector<8x256xf32>
    %cst_4 = arith.constant 0.000000e+00 : f32
    %8 = vector.broadcast %cst_4 : f32 to vector<8x256xf32>
    %9 = arith.select %6, %7, %8 : vector<8x256xi1>, vector<8x256xf32>
    %10 = math.absf %9 : vector<8x256xf32>
    %cst_5 = arith.constant 1.000000e+00 : f32
    %11 = vector.broadcast %cst_5 : f32 to vector<8x256xf32>
    %12 = arith.minimumf %10, %11 : vector<8x256xf32>
    %cst_6 = arith.constant 5.000000e-01 : f32
    %13 = vector.broadcast %cst_6 : f32 to vector<8x256xf32>
    %14 = arith.mulf %13, %12 : vector<8x256xf32>
    %15 = arith.subf %10, %14 : vector<8x256xf32>
    %16 = arith.mulf %12, %15 : vector<8x256xf32>
    %c0_7 = arith.constant 0 : index
    %c0_8 = arith.constant 0 : index
    %17 = vector.load %arg4[%c0_7, %c0_8] : memref<8x256xf32, #tpu.memory_space<vmem>>, vector<8x256xf32>
    %18 = arith.addf %17, %16 : vector<8x256xf32>
    %c0_9 = arith.constant 0 : index
    %c0_10 = arith.constant 0 : index
    %19 = vector.load %arg4[%c0_9, %c0_10] : memref<8x256xf32, #tpu.memory_space<vmem>>, vector<8x256xf32>
    tpu.vector_store %arg4[%c0_9, %c0_10], %18 {strides = array<i32>} : memref<8x256xf32, #tpu.memory_space<vmem>>, vector<8x256xf32>,
    return
  }
  func.func @transform_0(%arg0: i32, %arg1: i32) -> (i32, i32) {
    %c1_i32 = arith.constant 1 : i32
    %0 = arith.muli %arg0, %c1_i32 : i32
    %1 = arith.addi %0, %arg1 : i32
    %c0_i32 = arith.constant 0 : i32
    %c0_i32_0 = arith.constant 0 : i32
    return %1, %c0_i32 : i32, i32
  }
  func.func @transform_1(%arg0: i32, %arg1: i32) -> (i32, i32) {
    %c1_i32 = arith.constant 1 : i32
    %0 = arith.muli %arg0, %c1_i32 : i32
    %1 = arith.addi %0, %arg1 : i32
    %c0_i32 = arith.constant 0 : i32
    %c0_i32_0 = arith.constant 0 : i32
    return %1, %c0_i32 : i32, i32
  }
  func.func @transform_2(%arg0: i32, %arg1: i32) -> (i32, i32) {
    %c0_i32 = arith.constant 0 : i32
    %c0_i32_0 = arith.constant 0 : i32
    return %arg0, %c0_i32 : i32, i32
  }
}

</mosaic_0001>

<llo_original>
// kernel: huber_delta1_loss.1
$region0: #{huber_delta1_loss.1}
  #allocation0 [shape = 'u32[]', space=smem, size = 0x4, offset = 0x4, fixed_abs, tag = 'smem constant byte address 0x4 - core index']
  #allocation1 [shape = 'u32[144,128]{1,0:T(1,128)}', space=vmem, size = 0x12000, scoped, tag = 'internal scratch']
  %s0 = inlined_call_operand.vmem [shape: f32[8,256], index: 0, kind: input, shape index: {}]
  %s1 = inlined_call_operand.vmem [shape: f32[8,256], index: 1, kind: input, shape index: {}]
  %s2 = inlined_call_operand.vmem [shape: f32[8,256], index: 2, kind: output, shape index: {}]
  %s3 = sld [smem:[#allocation0]]
  $region22: #{huber_delta1_loss.1} parent=0
    _
  %s5 = ssub.s32 1, %s3
  %s6 = scalar_select 0, %s5, %s3
  // Predicated region
  $region2: #{huber_delta1_loss.1} parent=0 // pred_check
    _
  $region3: #{huber_delta1_loss.1} parent=0 // pred_check_branch
    %8 = sbr.rel (0) target = $region5
  $region4: #{huber_delta1_loss.1} parent=0 // pred_region
    %s9 = sadd.s32 0, 0
    %p10 = scmp.lt.s32.totalorder %s9, 0
    %s11 = scalar_select %p10, %s9, 0
    %s12 = smul.addr %s11, 2
    %s13 = smul.addr %s12, 8
    %s14 = scalar_lea.vmem %s0, %s13
    %s15 = sadd.s32 0, 0
  $region5: #{huber_delta1_loss.1} parent=0 // pred_fallthru
    _
  // Predicated region
  $region6: #{huber_delta1_loss.1} parent=0 // pred_check
    _
  $region7: #{huber_delta1_loss.1} parent=0 // pred_check_branch
    %17 = sbr.rel (0) target = $region9
  $region8: #{huber_delta1_loss.1} parent=0 // pred_region
    %s18 = sadd.s32 0, 0
    %p19 = scmp.lt.s32.totalorder %s18, 0
    %s20 = scalar_select %p19, %s18, 0
    %s21 = smul.addr %s20, 2
    %s22 = smul.addr %s21, 8
    %s23 = scalar_lea.vmem %s1, %s22
    %s24 = sadd.s32 0, 0
  $region9: #{huber_delta1_loss.1} parent=0 // pred_fallthru
    _
  %s25 = sadd.s32 0, 0
  %p26 = scmp.lt.s32.totalorder %s25, 0
  %s27 = scalar_select %p26, %s25, 0
  %s28 = smul.addr %s27, 2
  %s29 = smul.addr %s28, 8
  %s30 = scalar_lea.vmem %s0, %s29
  %s31 = sadd.s32 0, 0
  %p32 = scmp.lt.s32.totalorder %s31, 0
  %s33 = scalar_select %p32, %s31, 0
  %s34 = smul.addr %s33, 2
  %s35 = smul.addr %s34, 8
  %s36 = scalar_lea.vmem %s1, %s35
  %s37 = sadd.s32 0, 0
  %p38 = scmp.lt.s32.totalorder %s37, 0
  %s39 = scalar_select %p38, %s37, 0
  %s40 = smul.addr %s39, 2
  %s41 = smul.addr %s40, 8
  %s42 = scalar_lea.vmem %s0, %s41
  %s43 = sadd.s32 0, 0
  %s44 = sadd.s32 0, 0
  %p45 = scmp.lt.s32.totalorder %s44, 0
  %s46 = scalar_select %p45, %s44, 0
  %s47 = smul.addr %s46, 2
  %s48 = smul.addr %s47, 8
  %s49 = scalar_lea.vmem %s1, %s48
  %s50 = sadd.s32 0, 0
  %p51 = scmp.eq.s32.totalorder 0, 0
  // Predicated region
  $region10: #{huber_delta1_loss.1} parent=0 // pred_check
    %p52 = pneg %p51
  $region11: #{huber_delta1_loss.1} parent=0 // pred_check_branch
    %54 = sbr.rel (%p52) target = $region13
  $region12: #{huber_delta1_loss.1} parent=0 // pred_region
    %55 = vst [vmem:[%s2] sm:$0xff] 0.0
    %56 = vst [vmem:[%s2 + $0x8] sm:$0xff] 0.0
  $region13: #{huber_delta1_loss.1} parent=0 // pred_fallthru
    _
  %v57 = vld [vmem:[%s42] sm:$0xff]
  %v58 = vld [vmem:[%s42 + $0x8] sm:$0xff]
  %v59 = vld [vmem:[%s49] sm:$0xff]
  %v60 = vld [vmem:[%s49 + $0x8] sm:$0xff]
  %vm61 = vcmp.gt.f32.partialorder %v59, 0.0
  %vm62 = vcmp.gt.f32.partialorder %v60, 0.0
  %v63 = vsub.f32 %v57, %v59
  %v64 = vsub.f32 %v58, %v60
  %v65 = vsel %vm61, %v63, 0.0
  %v66 = vsel %vm62, %v64, 0.0
  %v67 = vand.u32 2147483647, %v65
  %v68 = vand.u32 2147483647, %v66
  %v69 = vmin.f32 %v67, 1.0
  %v70 = vmin.f32 %v68, 1.0
  %v71 = vmul.f32 %v69, 0.5
  %v72 = vmul.f32 %v70, 0.5
  %v73 = vsub.f32 %v67, %v71
  %v74 = vsub.f32 %v68, %v72
  %v75 = vmul.f32 %v69, %v73
  %v76 = vmul.f32 %v70, %v74
  %v77 = vld [vmem:[%s2] sm:$0xff]
  %v78 = vld [vmem:[%s2 + $0x8] sm:$0xff]
  %v79 = vadd.f32 %v77, %v75
  %v80 = vadd.f32 %v78, %v76
  %81 = vst [vmem:[%s2] sm:$0xff] %v79
  %82 = vst [vmem:[%s2 + $0x8] sm:$0xff] %v80
  // Predicated region
  $region14: #{huber_delta1_loss.1} parent=0 // pred_check
    _
  $region15: #{huber_delta1_loss.1} parent=0 // pred_check_branch
    %84 = sbr.rel (0) target = $region17
  $region16: #{huber_delta1_loss.1} parent=0 // pred_region
    _
  $region17: #{huber_delta1_loss.1} parent=0 // pred_fallthru
    _
  // Predicated region
  $region18: #{huber_delta1_loss.1} parent=0 // pred_check
    _
  $region19: #{huber_delta1_loss.1} parent=0 // pred_check_branch
    %86 = sbr.rel (0) target = $region21
  $region20: #{huber_delta1_loss.1} parent=0 // pred_region
    _
  $region21: #{huber_delta1_loss.1} parent=0 // pred_fallthru
    _

</llo_original>
